<compile_context>
chip_gen: v7x
topology: tpu7x:2x2x1
jax: 0.10.0
libtpu: 0.0.40
codegen_flags: <defaults>
</compile_context>

<pallas_src>
import functools

import jax
import jax.numpy as jnp
from jax.experimental import pallas as pl
from jax.experimental.pallas import tpu as pltpu

LN_EPS = 1e-5
VMEM_LIMIT_BYTES = 48 * 1024 * 1024   # explicit, safe on v5e/v6e/v7x


# ----------------------------- in-kernel math -----------------------------

def _erf(x):
    # Abramowitz & Stegun 7.1.26 rational approximation (max abs err ~1.5e-7).
    # The divide goes through pl.reciprocal(approx=True) -> EUP slot (keeps the
    # GELU epilogue off the saturated VALU path).
    a1, a2, a3, a4, a5 = 0.254829592, -0.284496736, 1.421413741, -1.453152027, 1.061405429
    p = 0.3275911
    s = jnp.where(x >= 0.0, 1.0, -1.0)
    ax = jnp.abs(x)
    t = pl.reciprocal(1.0 + p * ax, approx=True)
    poly = ((((a5 * t + a4) * t + a3) * t + a2) * t + a1) * t
    y = 1.0 - poly * jnp.exp(-ax * ax)
    return s * y


def _gelu_exact(x):
    # PyTorch nn.GELU default is the exact erf-based GELU.
    return 0.5 * x * (1.0 + _erf(x * 0.7071067811865476))


def _layernorm(x, g, b):
    # x: [rows, E] f32, g/b: [1, E] f32
    mu = jnp.mean(x, axis=-1, keepdims=True)
    var = jnp.mean((x - mu) * (x - mu), axis=-1, keepdims=True)
    return (x - mu) * jax.lax.rsqrt(var + LN_EPS) * g + b


# ----------------------------- Pallas kernels -----------------------------

def qkv_kernel(x_ref, g1_ref, beta1_ref, wqkv_ref, bqkv_ref,
               q_ref, k_ref, v_ref, *, num_heads):
    """LN1 + QKV projection for one [tS, E] row tile.

    Output layout is head-major bf16 [1, H, tS, Dh] so the attention kernel
    only does leading-dim (free) head indexing.  The softmax scale is already
    folded into the q columns of W_qkv / b_qkv by the wrapper.
    """
    x = x_ref[0].astype(jnp.float32)                       # [tS, E]
    _, E = x.shape
    H = num_heads
    Dh = E // H

    h = _layernorm(x, g1_ref[...], beta1_ref[...]).astype(jnp.bfloat16)
    qkv = (jnp.dot(h, wqkv_ref[...], preferred_element_type=jnp.float32)
           + bqkv_ref[...]).astype(jnp.bfloat16)           # [tS, 3E] bf16

    # Head split happens exactly once per token, here.
    for hh in range(H):
        q_ref[0, hh] = qkv[:, hh * Dh:(hh + 1) * Dh]
        k_ref[0, hh] = qkv[:, E + hh * Dh:E + (hh + 1) * Dh]
        v_ref[0, hh] = qkv[:, 2 * E + hh * Dh:2 * E + (hh + 1) * Dh]


def block_kernel(x_ref, q_ref, k_ref, v_ref, wproj_ref, bproj_ref,
                 g2_ref, beta2_ref, wfc1_ref, bfc1_ref, wfc2_ref, bfc2_ref,
                 o_ref, *, num_heads, hidden_chunk):
    """Fused attention + residual + MLP + residual for one [tQ, E] q-row tile.

    q_ref is the matching q-row tile [1, H, tQ, Dh]; k_ref / v_ref are the
    full sequence for this batch element [1, H, S, Dh] (exact row softmax).
    """
    x = x_ref[0].astype(jnp.float32)                       # [tQ, E]
    tQ, E = x.shape
    H = num_heads

    # ---- multi-head attention (per-head loop; all head access leading-dim).
    # For production H (12-16) bound this with lax.fori_loop(..., unroll=True).
    acc = jnp.zeros((tQ, E), jnp.float32)
    for hh in range(H):
        qh = q_ref[0, hh]                                  # [tQ, Dh] bf16, pre-scaled
        kh = k_ref[0, hh]                                  # [S,  Dh] bf16
        vh = v_ref[0, hh]                                  # [S,  Dh] bf16
        sc = jax.lax.dot_general(qh, kh, (((1,), (1,)), ((), ())),
                                 preferred_element_type=jnp.float32)   # [tQ, S]
        m = jnp.max(sc, axis=-1, keepdims=True)
        p = jnp.exp(sc - m)
        # approx reciprocal: rows sum to 1 +/- ~2^-12 (documented deviation).
        p = p * pl.reciprocal(jnp.sum(p, axis=-1, keepdims=True), approx=True)
        ctx = jnp.dot(p.astype(jnp.bfloat16), vh,
                      preferred_element_type=jnp.float32)              # [tQ, Dh]
        acc = acc + jnp.dot(ctx.astype(jnp.bfloat16), wproj_ref[hh],
                            preferred_element_type=jnp.float32)        # [tQ, E]
    x1 = x + acc + bproj_ref[...]

    # ---- MLP (fused; hidden dim processed in 128-multiple chunks).
    h2 = _layernorm(x1, g2_ref[...], beta2_ref[...]).astype(jnp.bfloat16)
    Hd = wfc1_ref.shape[1]
    macc = jnp.zeros((tQ, E), jnp.float32)
    for c0 in range(0, Hd, hidden_chunk):
        c1 = min(c0 + hidden_chunk, Hd)                    # ragged-tail guard
        hid = jnp.dot(h2, wfc1_ref[:, c0:c1],
                      preferred_element_type=jnp.float32) + bfc1_ref[:, c0:c1]
        hid = _gelu_exact(hid).astype(jnp.bfloat16)
        macc = macc + jnp.dot(hid, wfc2_ref[c0:c1, :],
                              preferred_element_type=jnp.float32)
    o_ref[0] = (x1 + macc + bfc2_ref[...]).astype(o_ref.dtype)


def final_kernel(x_ref, g_ref, beta_ref, w_ref, b_ref, o_ref):
    """Final LayerNorm + Linear projection on one [tS, E] row tile."""
    x = x_ref[0].astype(jnp.float32)
    h = _layernorm(x, g_ref[...], beta_ref[...]).astype(jnp.bfloat16)
    y = jnp.dot(h, w_ref[...], preferred_element_type=jnp.float32) + b_ref[...]
    o_ref[0] = y.astype(o_ref.dtype)


# ----------------------------- wrappers -----------------------------

def _choose_seq_tile(S, max_tile=512):
    """Largest divisor of S <= max_tile, preferring multiples of 256, then 128,
    then 8 (MXU fill / unmasked stores). Falls back to S (full extent)."""
    for align in (256, 128, 8):
        best = 0
        for t in range(align, min(S, max_tile) + 1, align):
            if S % t == 0:
                best = t
        if best:
            return best
    return S


def _compiler_params(n_axes):
    return pltpu.CompilerParams(
        dimension_semantics=("parallel",) * n_axes,
        vmem_limit_bytes=VMEM_LIMIT_BYTES)


def prepare_block(p, num_heads):
    """Derive kernel-ready layouts from canonical (PyTorch-like) params."""
    E = p["w_proj"].shape[0]
    H = num_heads
    Dh = E // H
    scale = Dh ** (-0.5)
    # Fold the softmax scale into the q columns of W_qkv / b_qkv (f32 math,
    # then cast to bf16) -> zero in-kernel cost.
    w_qkv = p["w_qkv"].astype(jnp.float32)
    w_qkv = jnp.concatenate([w_qkv[:, :E] * scale, w_qkv[:, E:]], axis=1)
    b_qkv = jnp.concatenate([p["b_qkv"][:, :E] * scale, p["b_qkv"][:, E:]], axis=1)
    return dict(
        w_qkv=w_qkv.astype(jnp.bfloat16),
        b_qkv=b_qkv.astype(jnp.float32),
        # W_proj rows are head-concat ordered -> [H, Dh, E] for leading-dim indexing.
        w_proj_h=p["w_proj"].reshape(H, Dh, E),
        b_proj=p["b_proj"],
        g1=p["g1"], beta1=p["beta1"], g2=p["g2"], beta2=p["beta2"],
        w_fc1=p["w_fc1"], b_fc1=p["b_fc1"],
        w_fc2=p["w_fc2"], b_fc2=p["b_fc2"],
    )


def run_qkv(x, bp, num_heads):
    B, S, E = x.shape
    H = num_heads
    Dh = E // H
    tS = _choose_seq_tile(S)
    kernel = functools.partial(qkv_kernel, num_heads=H)

    def wspec(shape):
        # Constant-index (weight) spec.  For production v7x, add
        # pipeline_mode=pl.Buffered(1) to avoid double-buffering weights.
        return pl.BlockSpec(shape, lambda b, s: (0,) * len(shape))

    qkv_shape = jax.ShapeDtypeStruct((B, H, S, Dh), jnp.bfloat16)
    return pl.pallas_call(
        kernel,
        out_shape=(qkv_shape, qkv_shape, qkv_shape),
        grid=(B, S // tS),
        in_specs=[
            pl.BlockSpec((1, tS, E), lambda b, s: (b, s, 0)),
            wspec((1, E)), wspec((1, E)),
            wspec((E, 3 * E)), wspec((1, 3 * E)),
        ],
        out_specs=[pl.BlockSpec((1, H, tS, Dh), lambda b, s: (b, 0, s, 0))] * 3,
        compiler_params=_compiler_params(2),
    )(x, bp["g1"], bp["beta1"], bp["w_qkv"], bp["b_qkv"])


def run_block(x, q, k, v, bp, num_heads, *, hidden_chunk=512):
    B, S, E = x.shape
    H = num_heads
    Dh = E // H
    Hd = bp["w_fc1"].shape[1]
    tQ = _choose_seq_tile(S)
    hc = min(hidden_chunk, Hd)
    kernel = functools.partial(block_kernel, num_heads=H, hidden_chunk=hc)

    def wspec(shape):
        return pl.BlockSpec(shape, lambda b, s: (0,) * len(shape))

    # TODO(synk): for production E/Hd on v7x, stream w_fc1/w_fc2 over an extra
    # "arbitrary" grid axis instead of keeping them fully VMEM-resident.
    return pl.pallas_call(
        kernel,
        out_shape=jax.ShapeDtypeStruct((B, S, E), x.dtype),
        grid=(B, S // tQ),
        in_specs=[
            pl.BlockSpec((1, tQ, E), lambda b, s: (b, s, 0)),         # x row tile
            pl.BlockSpec((1, H, tQ, Dh), lambda b, s: (b, 0, s, 0)),  # q row tile
            pl.BlockSpec((1, H, S, Dh), lambda b, s: (b, 0, 0, 0)),   # k full seq
            pl.BlockSpec((1, H, S, Dh), lambda b, s: (b, 0, 0, 0)),   # v full seq
            wspec((H, Dh, E)), wspec((1, E)),                         # w_proj_h, b_proj
            wspec((1, E)), wspec((1, E)),                             # g2, beta2
            wspec((E, Hd)), wspec((1, Hd)),                           # w_fc1, b_fc1
            wspec((Hd, E)), wspec((1, E)),                            # w_fc2, b_fc2
        ],
        out_specs=pl.BlockSpec((1, tQ, E), lambda b, s: (b, s, 0)),
        compiler_params=_compiler_params(2),
    )(x, q, k, v, bp["w_proj_h"], bp["b_proj"], bp["g2"], bp["beta2"],
      bp["w_fc1"], bp["b_fc1"], bp["w_fc2"], bp["b_fc2"])


def run_final(x, p):
    B, S, E = x.shape
    tS = _choose_seq_tile(S)

    def wspec(shape):
        return pl.BlockSpec(shape, lambda b, s: (0,) * len(shape))

    return pl.pallas_call(
        final_kernel,
        out_shape=jax.ShapeDtypeStruct((B, S, E), x.dtype),
        grid=(B, S // tS),
        in_specs=[
            pl.BlockSpec((1, tS, E), lambda b, s: (b, s, 0)),
            wspec((1, E)), wspec((1, E)),
            wspec((E, E)), wspec((1, E)),
        ],
        out_specs=pl.BlockSpec((1, tS, E), lambda b, s: (b, s, 0)),
        compiler_params=_compiler_params(2),
    )(x, p["g"], p["beta"], p["w"], p["b"])


def predictor_forward(x, block_params, final_params, num_heads):
    """x: [B, T, N, E] -> [B, T, N, E] (same semantics as Predictor.forward)."""
    B, T, N, E = x.shape
    h = x.reshape(B, T * N, E)
    for p in block_params:
        bp = prepare_block(p, num_heads)
        q, k, v = run_qkv(h, bp, num_heads)
        h = run_block(h, q, k, v, bp, num_heads)
    h = run_final(h, final_params)
    return h.reshape(B, T, N, E)


# ----------------------------- parameter init -----------------------------

def init_params(key, embed_dim, depth, num_heads, mlp_ratio):
    E = embed_dim
    Hd = int(E * mlp_ratio)
    bf16 = jnp.bfloat16
    block_params = []
    for _ in range(depth):
        keys = jax.random.split(key, 5)
        key = keys[0]
        block_params.append(dict(
            w_qkv=(0.02 * jax.random.normal(keys[1], (E, 3 * E), jnp.float32)).astype(bf16),
            b_qkv=jnp.zeros((1, 3 * E), jnp.float32),
            w_proj=(0.02 * jax.random.normal(keys[2], (E, E), jnp.float32)).astype(bf16),
            b_proj=jnp.zeros((1, E), jnp.float32),
            g1=jnp.ones((1, E), jnp.float32), beta1=jnp.zeros((1, E), jnp.float32),
            g2=jnp.ones((1, E), jnp.float32), beta2=jnp.zeros((1, E), jnp.float32),
            w_fc1=(0.02 * jax.random.normal(keys[3], (E, Hd), jnp.float32)).astype(bf16),
            b_fc1=jnp.zeros((1, Hd), jnp.float32),
            w_fc2=(0.02 * jax.random.normal(keys[4], (Hd, E), jnp.float32)).astype(bf16),
            b_fc2=jnp.zeros((1, E), jnp.float32),
        ))
    k1, k2 = jax.random.split(key)
    final_params = dict(
        g=jnp.ones((1, E), jnp.float32), beta=jnp.zeros((1, E), jnp.float32),
        w=(0.02 * jax.random.normal(k1, (E, E), jnp.float32)).astype(bf16),
        b=0.02 * jax.random.normal(k2, (1, E), jnp.float32),
    )
    return block_params, final_params


# ----------------------------- pure-JAX reference -----------------------------

def _ref_ln(x, g, b):
    mu = jnp.mean(x, axis=-1, keepdims=True)
    var = jnp.mean((x - mu) ** 2, axis=-1, keepdims=True)
    return (x - mu) / jnp.sqrt(var + LN_EPS) * g + b


def _f32(w):
    return w.astype(jnp.float32)


def _ref_block(x, p, H):
    B, S, E = x.shape
    Dh = E // H
    scale = Dh ** (-0.5)
    h = _ref_ln(x, p["g1"], p["beta1"])
    qkv = h @ _f32(p["w_qkv"]) + p["b_qkv"][0]
    qkv = qkv.reshape(B, S, 3, H, Dh).transpose(2, 0, 3, 1, 4)
    q, k, v = qkv[0], qkv[1], qkv[2]
    attn = jnp.einsum("bhqd,bhkd->bhqk", q, k) * scale
    attn = jax.nn.softmax(attn, axis=-1)
    ctx = jnp.einsum("bhqk,bhkd->bhqd", attn, v).transpose(0, 2, 1, 3).reshape(B, S, E)
    x = x + ctx @ _f32(p["w_proj"]) + p["b_proj"][0]
    h2 = _ref_ln(x, p["g2"], p["beta2"])
    m = jax.nn.gelu(h2 @ _f32(p["w_fc1"]) + p["b_fc1"][0], approximate=False)
    return x + m @ _f32(p["w_fc2"]) + p["b_fc2"][0]


def predictor_reference(x, block_params, final_params, num_heads):
    B, T, N, E = x.shape
    h = x.reshape(B, T * N, E)
    for p in block_params:
        h = _ref_block(h, p, num_heads)
    h = _ref_ln(h, final_params["g"], final_params["beta"])
    h = h @ _f32(final_params["w"]) + final_params["b"][0]
    return h.reshape(B, T, N, E)


# ----------------------------- main -----------------------------

if __name__ == "__main__":
    # Small shapes consistent with Predictor: x is [B, T, N, E].
    # NOTE: production E (384/768/1024) keeps the lane axis a multiple of 128;
    # this small test shape (E=64) is not representative of store efficiency.
    B, T, N, E = 2, 2, 8, 64
    NUM_HEADS = 8
    DEPTH = 2
    MLP_RATIO = 4.0

    key = jax.random.PRNGKey(0)
    kx, kp = jax.random.split(key)
    x = jax.random.normal(kx, (B, T, N, E), jnp.float32)
    block_params, final_params = init_params(kp, E, DEPTH, NUM_HEADS, MLP_RATIO)

    out = predictor_forward(x, block_params, final_params, NUM_HEADS)
    out = jax.block_until_ready(out)

    ref = predictor_reference(x, block_params, final_params, NUM_HEADS)
    assert out.shape == (B, T, N, E)
    # bf16 matmul operands + approx reciprocals in the kernel vs f32 reference
    # -> loosened tolerance.
    assert jnp.allclose(out, ref, atol=2e-2, rtol=2e-2), "mismatch vs pure-JAX reference"

    print("KERNEL_OK")
</pallas_src>

<mosaic_0001>
module attributes {stable_mosaic.version = 11 : i64} {
  func.func @qkv_kernel(%arg0: i32, %arg1: i32, %arg2: memref<1x16x64xf32, #tpu.memory_space<vmem>>, %arg3: memref<1x64xf32, #tpu.memory_space<vmem>>, %arg4: memref<1x64xf32, #tpu.memory_space<vmem>>, %arg5: memref<64x192xbf16, #tpu.memory_space<vmem>>, %arg6: memref<1x192xf32, #tpu.memory_space<vmem>>, %arg7: memref<1x8x16x8xbf16, #tpu.memory_space<vmem>>, %arg8: memref<1x8x16x8xbf16, #tpu.memory_space<vmem>>, %arg9: memref<1x8x16x8xbf16, #tpu.memory_space<vmem>>) attributes {dimension_semantics = [#tpu.dimension_semantics<parallel>, #tpu.dimension_semantics<parallel>], iteration_bounds = array<i64: 2, 1>, scalar_prefetch = 0 : i64, scratch_operands = 0 : i64, tpu.core_type = #tpu.core_type<tc>, window_params = [{transform_indices = @transform_0, window_bounds = array<i64: 1, 16, 64>}, {pipeline_mode = #tpu.pipeline_mode<synchronous>, transform_indices = @transform_1, window_bounds = array<i64: 1, 64>}, {pipeline_mode = #tpu.pipeline_mode<synchronous>, transform_indices = @transform_2, window_bounds = array<i64: 1, 64>}, {pipeline_mode = #tpu.pipeline_mode<synchronous>, transform_indices = @transform_3, window_bounds = array<i64: 64, 192>}, {pipeline_mode = #tpu.pipeline_mode<synchronous>, transform_indices = @transform_4, window_bounds = array<i64: 1, 192>}, {transform_indices = @transform_5, window_bounds = array<i64: 1, 8, 16, 8>}, {transform_indices = @transform_6, window_bounds = array<i64: 1, 8, 16, 8>}, {transform_indices = @transform_7, window_bounds = array<i64: 1, 8, 16, 8>}]} {
    %c0 = arith.constant 0 : index
    %c0_0 = arith.constant 0 : index
    %c0_1 = arith.constant 0 : index
    %0 = vector.load %arg2[%c0, %c0_0, %c0_1] : memref<1x16x64xf32, #tpu.memory_space<vmem>>, vector<1x16x64xf32>
    %1 = vector.shape_cast %0 : vector<1x16x64xf32> to vector<16x64xf32>
    %c0_2 = arith.constant 0 : index
    %c0_3 = arith.constant 0 : index
    %2 = vector.load %arg3[%c0_2, %c0_3] : memref<1x64xf32, #tpu.memory_space<vmem>>, vector<1x64xf32>
    %c0_4 = arith.constant 0 : index
    %c0_5 = arith.constant 0 : index
    %3 = vector.load %arg4[%c0_4, %c0_5] : memref<1x64xf32, #tpu.memory_space<vmem>>, vector<1x64xf32>
    %cst = arith.constant dense<0.000000e+00> : vector<16xf32>
    %4 = vector.multi_reduction <add>, %1, %cst [1] : vector<16x64xf32> to vector<16xf32>
    %5 = vector.shape_cast %4 : vector<16xf32> to vector<16x1xf32>
    %cst_6 = arith.constant 6.400000e+01 : f32
    %6 = vector.broadcast %cst_6 : f32 to vector<16x1xf32>
    %7 = arith.divf %5, %6 : vector<16x1xf32>
    %8 = vector.broadcast %7 : vector<16x1xf32> to vector<16x64xf32>
    %9 = arith.subf %1, %8 : vector<16x64xf32>
    %10 = vector.broadcast %7 : vector<16x1xf32> to vector<16x64xf32>
    %11 = arith.subf %1, %10 : vector<16x64xf32>
    %12 = arith.mulf %9, %11 : vector<16x64xf32>
    %cst_7 = arith.constant dense<0.000000e+00> : vector<16xf32>
    %13 = vector.multi_reduction <add>, %12, %cst_7 [1] : vector<16x64xf32> to vector<16xf32>
    %14 = vector.shape_cast %13 : vector<16xf32> to vector<16x1xf32>
    %cst_8 = arith.constant 6.400000e+01 : f32
    %15 = vector.broadcast %cst_8 : f32 to vector<16x1xf32>
    %16 = arith.divf %14, %15 : vector<16x1xf32>
    %17 = vector.broadcast %7 : vector<16x1xf32> to vector<16x64xf32>
    %18 = arith.subf %1, %17 : vector<16x64xf32>
    %cst_9 = arith.constant 9.99999974E-6 : f32
    %19 = vector.broadcast %cst_9 : f32 to vector<16x1xf32>
    %20 = arith.addf %16, %19 : vector<16x1xf32>
    %21 = math.rsqrt %20 : vector<16x1xf32>
    %22 = vector.broadcast %21 : vector<16x1xf32> to vector<16x64xf32>
    %23 = arith.mulf %18, %22 : vector<16x64xf32>
    %24 = vector.broadcast %2 : vector<1x64xf32> to vector<16x64xf32>
    %25 = arith.mulf %23, %24 : vector<16x64xf32>
    %26 = vector.broadcast %3 : vector<1x64xf32> to vector<16x64xf32>
    %27 = arith.addf %25, %26 : vector<16x64xf32>
    %28 = arith.truncf %27 : vector<16x64xf32> to vector<16x64xbf16>
    %c0_10 = arith.constant 0 : index
    %c0_11 = arith.constant 0 : index
    %29 = vector.load %arg5[%c0_10, %c0_11] : memref<64x192xbf16, #tpu.memory_space<vmem>>, vector<64x192xbf16>
    %cst_12 = arith.constant dense<0.000000e+00> : vector<16x192xf32>
    %30 = tpu.matmul %28, %29, %cst_12 {dimension_numbers = #tpu.dot_dimension_numbers<[1], [0], [0], [1], [0, 0, 1, 1], [], []>} : vector<16x64xbf16>, vector<64x192xbf16>, vector<16x192xf32> -> vector<16x192xf32>
    %c0_13 = arith.constant 0 : index
    %c0_14 = arith.constant 0 : index
    %31 = vector.load %arg6[%c0_13, %c0_14] : memref<1x192xf32, #tpu.memory_space<vmem>>, vector<1x192xf32>
    %32 = vector.broadcast %31 : vector<1x192xf32> to vector<16x192xf32>
    %33 = arith.addf %30, %32 : vector<16x192xf32>
    %34 = arith.truncf %33 : vector<16x192xf32> to vector<16x192xbf16>
    %35 = vector.extract_strided_slice %34 {offsets = [0, 0], sizes = [16, 8], strides = [1, 1]} : vector<16x192xbf16> to vector<16x8xbf16>
    %c0_15 = arith.constant 0 : index
    %c0_16 = arith.constant 0 : index
    %c0_17 = arith.constant 0 : index
    %c0_18 = arith.constant 0 : index
    %36 = vector.load %arg7[%c0_15, %c0_16, %c0_17, %c0_18] : memref<1x8x16x8xbf16, #tpu.memory_space<vmem>>, vector<1x1x16x8xbf16>
    %37 = vector.shape_cast %36 : vector<1x1x16x8xbf16> to vector<16x8xbf16>
    %38 = vector.shape_cast %35 : vector<16x8xbf16> to vector<1x1x16x8xbf16>
    tpu.vector_store %arg7[%c0_15, %c0_16, %c0_17, %c0_18], %38 {strides = array<i32>} : memref<1x8x16x8xbf16, #tpu.memory_space<vmem>>, vector<1x1x16x8xbf16>,
    %39 = vector.extract_strided_slice %34 {offsets = [0, 64], sizes = [16, 8], strides = [1, 1]} : vector<16x192xbf16> to vector<16x8xbf16>
    %c0_19 = arith.constant 0 : index
    %c0_20 = arith.constant 0 : index
    %c0_21 = arith.constant 0 : index
    %c0_22 = arith.constant 0 : index
    %40 = vector.load %arg8[%c0_19, %c0_20, %c0_21, %c0_22] : memref<1x8x16x8xbf16, #tpu.memory_space<vmem>>, vector<1x1x16x8xbf16>
    %41 = vector.shape_cast %40 : vector<1x1x16x8xbf16> to vector<16x8xbf16>
    %42 = vector.shape_cast %39 : vector<16x8xbf16> to vector<1x1x16x8xbf16>
    tpu.vector_store %arg8[%c0_19, %c0_20, %c0_21, %c0_22], %42 {strides = array<i32>} : memref<1x8x16x8xbf16, #tpu.memory_space<vmem>>, vector<1x1x16x8xbf16>,
    %43 = vector.extract_strided_slice %34 {offsets = [0, 128], sizes = [16, 8], strides = [1, 1]} : vector<16x192xbf16> to vector<16x8xbf16>
    %c0_23 = arith.constant 0 : index
    %c0_24 = arith.constant 0 : index
    %c0_25 = arith.constant 0 : index
    %c0_26 = arith.constant 0 : index
    %44 = vector.load %arg9[%c0_23, %c0_24, %c0_25, %c0_26] : memref<1x8x16x8xbf16, #tpu.memory_space<vmem>>, vector<1x1x16x8xbf16>
    %45 = vector.shape_cast %44 : vector<1x1x16x8xbf16> to vector<16x8xbf16>
    %46 = vector.shape_cast %43 : vector<16x8xbf16> to vector<1x1x16x8xbf16>
    tpu.vector_store %arg9[%c0_23, %c0_24, %c0_25, %c0_26], %46 {strides = array<i32>} : memref<1x8x16x8xbf16, #tpu.memory_space<vmem>>, vector<1x1x16x8xbf16>,
    %47 = vector.extract_strided_slice %34 {offsets = [0, 8], sizes = [16, 8], strides = [1, 1]} : vector<16x192xbf16> to vector<16x8xbf16>
    %c0_27 = arith.constant 0 : index
    %c1 = arith.constant 1 : index
    %c0_28 = arith.constant 0 : index
    %c0_29 = arith.constant 0 : index
    %48 = vector.load %arg7[%c0_27, %c1, %c0_28, %c0_29] : memref<1x8x16x8xbf16, #tpu.memory_space<vmem>>, vector<1x1x16x8xbf16>
    %49 = vector.shape_cast %48 : vector<1x1x16x8xbf16> to vector<16x8xbf16>
    %50 = vector.shape_cast %47 : vector<16x8xbf16> to vector<1x1x16x8xbf16>
    tpu.vector_store %arg7[%c0_27, %c1, %c0_28, %c0_29], %50 {strides = array<i32>} : memref<1x8x16x8xbf16, #tpu.memory_space<vmem>>, vector<1x1x16x8xbf16>,
    %51 = vector.extract_strided_slice %34 {offsets = [0, 72], sizes = [16, 8], strides = [1, 1]} : vector<16x192xbf16> to vector<16x8xbf16>
    %c0_30 = arith.constant 0 : index
    %c1_31 = arith.constant 1 : index
    %c0_32 = arith.constant 0 : index
    %c0_33 = arith.constant 0 : index
    %52 = vector.load %arg8[%c0_30, %c1_31, %c0_32, %c0_33] : memref<1x8x16x8xbf16, #tpu.memory_space<vmem>>, vector<1x1x16x8xbf16>
    %53 = vector.shape_cast %52 : vector<1x1x16x8xbf16> to vector<16x8xbf16>
    %54 = vector.shape_cast %51 : vector<16x8xbf16> to vector<1x1x16x8xbf16>
    tpu.vector_store %arg8[%c0_30, %c1_31, %c0_32, %c0_33], %54 {strides = array<i32>} : memref<1x8x16x8xbf16, #tpu.memory_space<vmem>>, vector<1x1x16x8xbf16>,
    %55 = vector.extract_strided_slice %34 {offsets = [0, 136], sizes = [16, 8], strides = [1, 1]} : vector<16x192xbf16> to vector<16x8xbf16>
    %c0_34 = arith.constant 0 : index
    %c1_35 = arith.constant 1 : index
    %c0_36 = arith.constant 0 : index
    %c0_37 = arith.constant 0 : index
    %56 = vector.load %arg9[%c0_34, %c1_35, %c0_36, %c0_37] : memref<1x8x16x8xbf16, #tpu.memory_space<vmem>>, vector<1x1x16x8xbf16>
    %57 = vector.shape_cast %56 : vector<1x1x16x8xbf16> to vector<16x8xbf16>
    %58 = vector.shape_cast %55 : vector<16x8xbf16> to vector<1x1x16x8xbf16>
    tpu.vector_store %arg9[%c0_34, %c1_35, %c0_36, %c0_37], %58 {strides = array<i32>} : memref<1x8x16x8xbf16, #tpu.memory_space<vmem>>, vector<1x1x16x8xbf16>,
    %59 = vector.extract_strided_slice %34 {offsets = [0, 16], sizes = [16, 8], strides = [1, 1]} : vector<16x192xbf16> to vector<16x8xbf16>
    %c0_38 = arith.constant 0 : index
    %c2 = arith.constant 2 : index
    %c0_39 = arith.constant 0 : index
    %c0_40 = arith.constant 0 : index
    %60 = vector.load %arg7[%c0_38, %c2, %c0_39, %c0_40] : memref<1x8x16x8xbf16, #tpu.memory_space<vmem>>, vector<1x1x16x8xbf16>
    %61 = vector.shape_cast %60 : vector<1x1x16x8xbf16> to vector<16x8xbf16>
    %62 = vector.shape_cast %59 : vector<16x8xbf16> to vector<1x1x16x8xbf16>
    tpu.vector_store %arg7[%c0_38, %c2, %c0_39, %c0_40], %62 {strides = array<i32>} : memref<1x8x16x8xbf16, #tpu.memory_space<vmem>>, vector<1x1x16x8xbf16>,
    %63 = vector.extract_strided_slice %34 {offsets = [0, 80], sizes = [16, 8], strides = [1, 1]} : vector<16x192xbf16> to vector<16x8xbf16>
    %c0_41 = arith.constant 0 : index
    %c2_42 = arith.constant 2 : index
    %c0_43 = arith.constant 0 : index
    %c0_44 = arith.constant 0 : index
    %64 = vector.load %arg8[%c0_41, %c2_42, %c0_43, %c0_44] : memref<1x8x16x8xbf16, #tpu.memory_space<vmem>>, vector<1x1x16x8xbf16>
    %65 = vector.shape_cast %64 : vector<1x1x16x8xbf16> to vector<16x8xbf16>
    %66 = vector.shape_cast %63 : vector<16x8xbf16> to vector<1x1x16x8xbf16>
    tpu.vector_store %arg8[%c0_41, %c2_42, %c0_43, %c0_44], %66 {strides = array<i32>} : memref<1x8x16x8xbf16, #tpu.memory_space<vmem>>, vector<1x1x16x8xbf16>,
    %67 = vector.extract_strided_slice %34 {offsets = [0, 144], sizes = [16, 8], strides = [1, 1]} : vector<16x192xbf16> to vector<16x8xbf16>
    %c0_45 = arith.constant 0 : index
    %c2_46 = arith.constant 2 : index
    %c0_47 = arith.constant 0 : index
    %c0_48 = arith.constant 0 : index
    %68 = vector.load %arg9[%c0_45, %c2_46, %c0_47, %c0_48] : memref<1x8x16x8xbf16, #tpu.memory_space<vmem>>, vector<1x1x16x8xbf16>
    %69 = vector.shape_cast %68 : vector<1x1x16x8xbf16> to vector<16x8xbf16>
    %70 = vector.shape_cast %67 : vector<16x8xbf16> to vector<1x1x16x8xbf16>
    tpu.vector_store %arg9[%c0_45, %c2_46, %c0_47, %c0_48], %70 {strides = array<i32>} : memref<1x8x16x8xbf16, #tpu.memory_space<vmem>>, vector<1x1x16x8xbf16>,
    %71 = vector.extract_strided_slice %34 {offsets = [0, 24], sizes = [16, 8], strides = [1, 1]} : vector<16x192xbf16> to vector<16x8xbf16>
    %c0_49 = arith.constant 0 : index
    %c3 = arith.constant 3 : index
    %c0_50 = arith.constant 0 : index
    %c0_51 = arith.constant 0 : index
    %72 = vector.load %arg7[%c0_49, %c3, %c0_50, %c0_51] : memref<1x8x16x8xbf16, #tpu.memory_space<vmem>>, vector<1x1x16x8xbf16>
    %73 = vector.shape_cast %72 : vector<1x1x16x8xbf16> to vector<16x8xbf16>
    %74 = vector.shape_cast %71 : vector<16x8xbf16> to vector<1x1x16x8xbf16>
    tpu.vector_store %arg7[%c0_49, %c3, %c0_50, %c0_51], %74 {strides = array<i32>} : memref<1x8x16x8xbf16, #tpu.memory_space<vmem>>, vector<1x1x16x8xbf16>,
    %75 = vector.extract_strided_slice %34 {offsets = [0, 88], sizes = [16, 8], strides = [1, 1]} : vector<16x192xbf16> to vector<16x8xbf16>
    %c0_52 = arith.constant 0 : index
    %c3_53 = arith.constant 3 : index
    %c0_54 = arith.constant 0 : index
    %c0_55 = arith.constant 0 : index
    %76 = vector.load %arg8[%c0_52, %c3_53, %c0_54, %c0_55] : memref<1x8x16x8xbf16, #tpu.memory_space<vmem>>, vector<1x1x16x8xbf16>
    %77 = vector.shape_cast %76 : vector<1x1x16x8xbf16> to vector<16x8xbf16>
    %78 = vector.shape_cast %75 : vector<16x8xbf16> to vector<1x1x16x8xbf16>
    tpu.vector_store %arg8[%c0_52, %c3_53, %c0_54, %c0_55], %78 {strides = array<i32>} : memref<1x8x16x8xbf16, #tpu.memory_space<vmem>>, vector<1x1x16x8xbf16>,
    %79 = vector.extract_strided_slice %34 {offsets = [0, 152], sizes = [16, 8], strides = [1, 1]} : vector<16x192xbf16> to vector<16x8xbf16>
    %c0_56 = arith.constant 0 : index
    %c3_57 = arith.constant 3 : index
    %c0_58 = arith.constant 0 : index
    %c0_59 = arith.constant 0 : index
    %80 = vector.load %arg9[%c0_56, %c3_57, %c0_58, %c0_59] : memref<1x8x16x8xbf16, #tpu.memory_space<vmem>>, vector<1x1x16x8xbf16>
    %81 = vector.shape_cast %80 : vector<1x1x16x8xbf16> to vector<16x8xbf16>
    %82 = vector.shape_cast %79 : vector<16x8xbf16> to vector<1x1x16x8xbf16>
    tpu.vector_store %arg9[%c0_56, %c3_57, %c0_58, %c0_59], %82 {strides = array<i32>} : memref<1x8x16x8xbf16, #tpu.memory_space<vmem>>, vector<1x1x16x8xbf16>,
    %83 = vector.extract_strided_slice %34 {offsets = [0, 32], sizes = [16, 8], strides = [1, 1]} : vector<16x192xbf16> to vector<16x8xbf16>
    %c0_60 = arith.constant 0 : index
    %c4 = arith.constant 4 : index
    %c0_61 = arith.constant 0 : index
    %c0_62 = arith.constant 0 : index
    %84 = vector.load %arg7[%c0_60, %c4, %c0_61, %c0_62] : memref<1x8x16x8xbf16, #tpu.memory_space<vmem>>, vector<1x1x16x8xbf16>
    %85 = vector.shape_cast %84 : vector<1x1x16x8xbf16> to vector<16x8xbf16>
    %86 = vector.shape_cast %83 : vector<16x8xbf16> to vector<1x1x16x8xbf16>
    tpu.vector_store %arg7[%c0_60, %c4, %c0_61, %c0_62], %86 {strides = array<i32>} : memref<1x8x16x8xbf16, #tpu.memory_space<vmem>>, vector<1x1x16x8xbf16>,
    %87 = vector.extract_strided_slice %34 {offsets = [0, 96], sizes = [16, 8], strides = [1, 1]} : vector<16x192xbf16> to vector<16x8xbf16>
    %c0_63 = arith.constant 0 : index
    %c4_64 = arith.constant 4 : index
    %c0_65 = arith.constant 0 : index
    %c0_66 = arith.constant 0 : index
    %88 = vector.load %arg8[%c0_63, %c4_64, %c0_65, %c0_66] : memref<1x8x16x8xbf16, #tpu.memory_space<vmem>>, vector<1x1x16x8xbf16>
    %89 = vector.shape_cast %88 : vector<1x1x16x8xbf16> to vector<16x8xbf16>
    %90 = vector.shape_cast %87 : vector<16x8xbf16> to vector<1x1x16x8xbf16>
    tpu.vector_store %arg8[%c0_63, %c4_64, %c0_65, %c0_66], %90 {strides = array<i32>} : memref<1x8x16x8xbf16, #tpu.memory_space<vmem>>, vector<1x1x16x8xbf16>,
    %91 = vector.extract_strided_slice %34 {offsets = [0, 160], sizes = [16, 8], strides = [1, 1]} : vector<16x192xbf16> to vector<16x8xbf16>
    %c0_67 = arith.constant 0 : index
    %c4_68 = arith.constant 4 : index
    %c0_69 = arith.constant 0 : index
    %c0_70 = arith.constant 0 : index
    %92 = vector.load %arg9[%c0_67, %c4_68, %c0_69, %c0_70] : memref<1x8x16x8xbf16, #tpu.memory_space<vmem>>, vector<1x1x16x8xbf16>
    %93 = vector.shape_cast %92 : vector<1x1x16x8xbf16> to vector<16x8xbf16>
    %94 = vector.shape_cast %91 : vector<16x8xbf16> to vector<1x1x16x8xbf16>
    tpu.vector_store %arg9[%c0_67, %c4_68, %c0_69, %c0_70], %94 {strides = array<i32>} : memref<1x8x16x8xbf16, #tpu.memory_space<vmem>>, vector<1x1x16x8xbf16>,
    %95 = vector.extract_strided_slice %34 {offsets = [0, 40], sizes = [16, 8], strides = [1, 1]} : vector<16x192xbf16> to vector<16x8xbf16>
    %c0_71 = arith.constant 0 : index
    %c5 = arith.constant 5 : index
    %c0_72 = arith.constant 0 : index
    %c0_73 = arith.constant 0 : index
    %96 = vector.load %arg7[%c0_71, %c5, %c0_72, %c0_73] : memref<1x8x16x8xbf16, #tpu.memory_space<vmem>>, vector<1x1x16x8xbf16>
    %97 = vector.shape_cast %96 : vector<1x1x16x8xbf16> to vector<16x8xbf16>
    %98 = vector.shape_cast %95 : vector<16x8xbf16> to vector<1x1x16x8xbf16>
    tpu.vector_store %arg7[%c0_71, %c5, %c0_72, %c0_73], %98 {strides = array<i32>} : memref<1x8x16x8xbf16, #tpu.memory_space<vmem>>, vector<1x1x16x8xbf16>,
    %99 = vector.extract_strided_slice %34 {offsets = [0, 104], sizes = [16, 8], strides = [1, 1]} : vector<16x192xbf16> to vector<16x8xbf16>
    %c0_74 = arith.constant 0 : index
    %c5_75 = arith.constant 5 : index
    %c0_76 = arith.constant 0 : index
    %c0_77 = arith.constant 0 : index
    %100 = vector.load %arg8[%c0_74, %c5_75, %c0_76, %c0_77] : memref<1x8x16x8xbf16, #tpu.memory_space<vmem>>, vector<1x1x16x8xbf16>
    %101 = vector.shape_cast %100 : vector<1x1x16x8xbf16> to vector<16x8xbf16>
    %102 = vector.shape_cast %99 : vector<16x8xbf16> to vector<1x1x16x8xbf16>
    tpu.vector_store %arg8[%c0_74, %c5_75, %c0_76, %c0_77], %102 {strides = array<i32>} : memref<1x8x16x8xbf16, #tpu.memory_space<vmem>>, vector<1x1x16x8xbf16>,
    %103 = vector.extract_strided_slice %34 {offsets = [0, 168], sizes = [16, 8], strides = [1, 1]} : vector<16x192xbf16> to vector<16x8xbf16>
    %c0_78 = arith.constant 0 : index
    %c5_79 = arith.constant 5 : index
    %c0_80 = arith.constant 0 : index
    %c0_81 = arith.constant 0 : index
    %104 = vector.load %arg9[%c0_78, %c5_79, %c0_80, %c0_81] : memref<1x8x16x8xbf16, #tpu.memory_space<vmem>>, vector<1x1x16x8xbf16>
    %105 = vector.shape_cast %104 : vector<1x1x16x8xbf16> to vector<16x8xbf16>
    %106 = vector.shape_cast %103 : vector<16x8xbf16> to vector<1x1x16x8xbf16>
    tpu.vector_store %arg9[%c0_78, %c5_79, %c0_80, %c0_81], %106 {strides = array<i32>} : memref<1x8x16x8xbf16, #tpu.memory_space<vmem>>, vector<1x1x16x8xbf16>,
    %107 = vector.extract_strided_slice %34 {offsets = [0, 48], sizes = [16, 8], strides = [1, 1]} : vector<16x192xbf16> to vector<16x8xbf16>
    %c0_82 = arith.constant 0 : index
    %c6 = arith.constant 6 : index
    %c0_83 = arith.constant 0 : index
    %c0_84 = arith.constant 0 : index
    %108 = vector.load %arg7[%c0_82, %c6, %c0_83, %c0_84] : memref<1x8x16x8xbf16, #tpu.memory_space<vmem>>, vector<1x1x16x8xbf16>
    %109 = vector.shape_cast %108 : vector<1x1x16x8xbf16> to vector<16x8xbf16>
    %110 = vector.shape_cast %107 : vector<16x8xbf16> to vector<1x1x16x8xbf16>
    tpu.vector_store %arg7[%c0_82, %c6, %c0_83, %c0_84], %110 {strides = array<i32>} : memref<1x8x16x8xbf16, #tpu.memory_space<vmem>>, vector<1x1x16x8xbf16>,
    %111 = vector.extract_strided_slice %34 {offsets = [0, 112], sizes = [16, 8], strides = [1, 1]} : vector<16x192xbf16> to vector<16x8xbf16>
    %c0_85 = arith.constant 0 : index
    %c6_86 = arith.constant 6 : index
    %c0_87 = arith.constant 0 : index
    %c0_88 = arith.constant 0 : index
    %112 = vector.load %arg8[%c0_85, %c6_86, %c0_87, %c0_88] : memref<1x8x16x8xbf16, #tpu.memory_space<vmem>>, vector<1x1x16x8xbf16>
    %113 = vector.shape_cast %112 : vector<1x1x16x8xbf16> to vector<16x8xbf16>
    %114 = vector.shape_cast %111 : vector<16x8xbf16> to vector<1x1x16x8xbf16>
    tpu.vector_store %arg8[%c0_85, %c6_86, %c0_87, %c0_88], %114 {strides = array<i32>} : memref<1x8x16x8xbf16, #tpu.memory_space<vmem>>, vector<1x1x16x8xbf16>,
    %115 = vector.extract_strided_slice %34 {offsets = [0, 176], sizes = [16, 8], strides = [1, 1]} : vector<16x192xbf16> to vector<16x8xbf16>
    %c0_89 = arith.constant 0 : index
    %c6_90 = arith.constant 6 : index
    %c0_91 = arith.constant 0 : index
    %c0_92 = arith.constant 0 : index
    %116 = vector.load %arg9[%c0_89, %c6_90, %c0_91, %c0_92] : memref<1x8x16x8xbf16, #tpu.memory_space<vmem>>, vector<1x1x16x8xbf16>
    %117 = vector.shape_cast %116 : vector<1x1x16x8xbf16> to vector<16x8xbf16>
    %118 = vector.shape_cast %115 : vector<16x8xbf16> to vector<1x1x16x8xbf16>
    tpu.vector_store %arg9[%c0_89, %c6_90, %c0_91, %c0_92], %118 {strides = array<i32>} : memref<1x8x16x8xbf16, #tpu.memory_space<vmem>>, vector<1x1x16x8xbf16>,
    %119 = vector.extract_strided_slice %34 {offsets = [0, 56], sizes = [16, 8], strides = [1, 1]} : vector<16x192xbf16> to vector<16x8xbf16>
    %c0_93 = arith.constant 0 : index
    %c7 = arith.constant 7 : index
    %c0_94 = arith.constant 0 : index
    %c0_95 = arith.constant 0 : index
    %120 = vector.load %arg7[%c0_93, %c7, %c0_94, %c0_95] : memref<1x8x16x8xbf16, #tpu.memory_space<vmem>>, vector<1x1x16x8xbf16>
    %121 = vector.shape_cast %120 : vector<1x1x16x8xbf16> to vector<16x8xbf16>
    %122 = vector.shape_cast %119 : vector<16x8xbf16> to vector<1x1x16x8xbf16>
    tpu.vector_store %arg7[%c0_93, %c7, %c0_94, %c0_95], %122 {strides = array<i32>} : memref<1x8x16x8xbf16, #tpu.memory_space<vmem>>, vector<1x1x16x8xbf16>,
    %123 = vector.extract_strided_slice %34 {offsets = [0, 120], sizes = [16, 8], strides = [1, 1]} : vector<16x192xbf16> to vector<16x8xbf16>
    %c0_96 = arith.constant 0 : index
    %c7_97 = arith.constant 7 : index
    %c0_98 = arith.constant 0 : index
    %c0_99 = arith.constant 0 : index
    %124 = vector.load %arg8[%c0_96, %c7_97, %c0_98, %c0_99] : memref<1x8x16x8xbf16, #tpu.memory_space<vmem>>, vector<1x1x16x8xbf16>
    %125 = vector.shape_cast %124 : vector<1x1x16x8xbf16> to vector<16x8xbf16>
    %126 = vector.shape_cast %123 : vector<16x8xbf16> to vector<1x1x16x8xbf16>
    tpu.vector_store %arg8[%c0_96, %c7_97, %c0_98, %c0_99], %126 {strides = array<i32>} : memref<1x8x16x8xbf16, #tpu.memory_space<vmem>>, vector<1x1x16x8xbf16>,
    %127 = vector.extract_strided_slice %34 {offsets = [0, 184], sizes = [16, 8], strides = [1, 1]} : vector<16x192xbf16> to vector<16x8xbf16>
    %c0_100 = arith.constant 0 : index
    %c7_101 = arith.constant 7 : index
    %c0_102 = arith.constant 0 : index
    %c0_103 = arith.constant 0 : index
    %128 = vector.load %arg9[%c0_100, %c7_101, %c0_102, %c0_103] : memref<1x8x16x8xbf16, #tpu.memory_space<vmem>>, vector<1x1x16x8xbf16>
    %129 = vector.shape_cast %128 : vector<1x1x16x8xbf16> to vector<16x8xbf16>
    %130 = vector.shape_cast %127 : vector<16x8xbf16> to vector<1x1x16x8xbf16>
    tpu.vector_store %arg9[%c0_100, %c7_101, %c0_102, %c0_103], %130 {strides = array<i32>} : memref<1x8x16x8xbf16, #tpu.memory_space<vmem>>, vector<1x1x16x8xbf16>,
    return
  }
  func.func @transform_0(%arg0: i32, %arg1: i32) -> (i32, i32, i32) {
    %c0_i32 = arith.constant 0 : i32
    %c0_i32_0 = arith.constant 0 : i32
    return %arg0, %arg1, %c0_i32 : i32, i32, i32
  }
  func.func @transform_1(%arg0: i32, %arg1: i32) -> (i32, i32) {
    %c0_i32 = arith.constant 0 : i32
    %c0_i32_0 = arith.constant 0 : i32
    %c0_i32_1 = arith.constant 0 : i32
    return %c0_i32, %c0_i32_0 : i32, i32
  }
  func.func @transform_2(%arg0: i32, %arg1: i32) -> (i32, i32) {
    %c0_i32 = arith.constant 0 : i32
    %c0_i32_0 = arith.constant 0 : i32
    %c0_i32_1 = arith.constant 0 : i32
    return %c0_i32, %c0_i32_0 : i32, i32
  }
  func.func @transform_3(%arg0: i32, %arg1: i32) -> (i32, i32) {
    %c0_i32 = arith.constant 0 : i32
    %c0_i32_0 = arith.constant 0 : i32
    %c0_i32_1 = arith.constant 0 : i32
    return %c0_i32, %c0_i32_0 : i32, i32
  }
  func.func @transform_4(%arg0: i32, %arg1: i32) -> (i32, i32) {
    %c0_i32 = arith.constant 0 : i32
    %c0_i32_0 = arith.constant 0 : i32
    %c0_i32_1 = arith.constant 0 : i32
    return %c0_i32, %c0_i32_0 : i32, i32
  }
  func.func @transform_5(%arg0: i32, %arg1: i32) -> (i32, i32, i32, i32) {
    %c0_i32 = arith.constant 0 : i32
    %c0_i32_0 = arith.constant 0 : i32
    %c0_i32_1 = arith.constant 0 : i32
    return %arg0, %c0_i32, %arg1, %c0_i32_0 : i32, i32, i32, i32
  }
  func.func @transform_6(%arg0: i32, %arg1: i32) -> (i32, i32, i32, i32) {
    %c0_i32 = arith.constant 0 : i32
    %c0_i32_0 = arith.constant 0 : i32
    %c0_i32_1 = arith.constant 0 : i32
    return %arg0, %c0_i32, %arg1, %c0_i32_0 : i32, i32, i32, i32
  }
  func.func @transform_7(%arg0: i32, %arg1: i32) -> (i32, i32, i32, i32) {
    %c0_i32 = arith.constant 0 : i32
    %c0_i32_0 = arith.constant 0 : i32
    %c0_i32_1 = arith.constant 0 : i32
    return %arg0, %c0_i32, %arg1, %c0_i32_0 : i32, i32, i32, i32
  }
}

</mosaic_0001>

<llo_original>
// kernel: tpu_custom_call.1
$region0: #{tpu_custom_call.1}
  #allocation0 [shape = 'u32[]', space=smem, size = 0x4, offset = 0x4, fixed_abs, tag = 'smem constant byte address 0x4 - core index']
  #allocation1 [shape = 'u32[144,128]{1,0:T(1,128)}', space=vmem, size = 0x12000, scoped, tag = 'internal scratch']
  %s0 = inlined_call_operand.hbm [shape: f32[2,16,64], index: 0, kind: input, shape index: {}]
  %s1 = inlined_call_operand.vmem [shape: f32[1,64], index: 1, kind: input, shape index: {}]
  %s2 = inlined_call_operand.vmem [shape: f32[1,64], index: 2, kind: input, shape index: {}]
  %s3 = inlined_call_operand.hbm [shape: bf16[64,192], index: 3, kind: input, shape index: {}]
  %s4 = inlined_call_operand.vmem [shape: f32[1,192], index: 4, kind: input, shape index: {}]
  %s5 = inlined_call_operand.vmem [shape: bf16[2,8,16,8], index: 5, kind: output, shape index: {0}]
  %s6 = inlined_call_operand.vmem [shape: bf16[2,8,16,8], index: 6, kind: output, shape index: {1}]
  %s7 = inlined_call_operand.vmem [shape: bf16[2,8,16,8], index: 7, kind: output, shape index: {2}]
  %8 = xla_tuple %s5, %s6, %s7
  %s9 = sld [smem:[#allocation0]]
  $region77: #{tpu_custom_call.1} parent=0
    _
  %s11 = ssub.s32 1, %s9
  %s12 = scalar_select 0, %s11, %s9
  $region1: #{tpu_custom_call.1} parent=0
    #allocation2 [shape = 'u8[16384]{0}', space=vmem, size = 0x4000, scoped, tag = 'input window, operand 0']
    #allocation3 [shape = 's32[2]{0}', space=sflag, size = 0x8, scoped, tag = 'scoped memory for tpu_custom_call.1']
    #allocation4 [shape = 'u8[32768]{0}', space=vmem, size = 0x8000, scoped, tag = 'input window, operand 3, single buffered']
    #allocation5 [shape = 's32[1]{0}', space=sflag, size = 0x4, scoped, tag = 'scoped memory for tpu_custom_call.1']
    %13 = vsyncpa [#allocation3], 0
    %s14 = scalar_lea.sflag [#allocation3], 1
    %15 = vsyncpa %s14, 0
    %16 = vsyncpa [#allocation5], 0
    loop: start=0, step=1, limit=4
    $region2: #{tpu_custom_call.1} parent=1 // loop_pre_header
      _
    $region3: #{tpu_custom_call.1} parent=1 // loop_header
      %s18 = sphi 0, %s22
      %p19 = scmp.ge.s32.totalorder %s18, 4
      %s25 = sphi 0, %s37
      %s26 = sphi 0, %s33
      %s27 = sphi 0, %s25
      %s28 = sphi 0, %s26
      %s29 = sphi 0, %s27
      %s30 = sphi 0, %s28
      %s42 = sphi 0, %s44
      %s45 = sphi 0, %s42
      %s46 = sphi 0, %s45
      %s62 = sphi 0, %s46
      %s66 = sphi 0, %s66
      %s68 = sphi 0, %s66
      %s69 = sphi 0, %s68
      %s83 = sphi 0, %s69
      %s87 = sphi 0, %s87
      %s89 = sphi 0, %s87
      %s90 = sphi 0, %s89
      %s104 = sphi 0, %s90
      %s108 = sphi 0, %s108
      %s110 = sphi 0, %s108
      %s111 = sphi 0, %s110
      %s125 = sphi 0, %s111
      %s129 = sphi 0, %s129
      %s131 = sphi 0, %s129
      %s132 = sphi 0, %s131
      %s146 = sphi 0, %s132
      %s154 = sphi 0, %s156
      %s157 = sphi 0, %s154
      %s158 = sphi 0, %s157
      %s174 = sphi 0, %s158
      %s182 = sphi 0, %s184
      %s185 = sphi 0, %s182
      %s186 = sphi 0, %s185
      %s202 = sphi 0, %s186
      %s210 = sphi 0, %s212
      %s213 = sphi 0, %s210
      %s214 = sphi 0, %s213
      %s230 = sphi 0, %s214
    $region4: #{tpu_custom_call.1} parent=1 // loop_header_branch
      %21 = sbr.rel (%p19) target = $region8
    $region5: #{tpu_custom_call.1} parent=1 // loop_body
      %s23 = ssub.s32 %s18, 1
      %s24 = ssub.s32 %s18, 2
      %s31 = sadd.s32 1, %s26
      %p32 = scmp.ge.s32.totalorder %s31, 1
      %s33 = scalar_select %p32, 0, %s31
      %s34 = sadd.s32 1, %s25
      %s35 = scalar_select %p32, %s34, %s25
      %p36 = scmp.ge.s32.totalorder %s35, 2
      %s37 = scalar_select %p36, 0, %s35
      %s38 = ssub.s32 %s25, %s37
      %s39 = ssub.s32 %s26, %s33
      %s40 = sor.u32 %s38, %s39
      %p41 = scmp.eq.s32.totalorder %s40, 0
      %s43 = sadd.s32 %s42, 1
      %s44 = scalar_select %p41, %s42, %s43
      %p47 = pneg %p41
      %p48 = scmp.eq.s32.totalorder %s18, 1
      %p49 = por %p47, %p48
      %p50 = scmp.ne.s32.totalorder %s42, %s45
      %p51 = scmp.eq.s32.totalorder %s18, 0
      %p52 = por %p50, %p51
      %p53 = scmp.ne.s32.totalorder %s42, %s45
      %p54 = scmp.eq.s32.totalorder %s23, 1
      %p55 = por %p53, %p54
      %p56 = scmp.ne.s32.totalorder %s45, %s46
      %p57 = scmp.eq.s32.totalorder %s23, 0
      %p58 = por %p56, %p57
      %p59 = scmp.ne.s32.totalorder %s45, %s46
      %p60 = scmp.eq.s32.totalorder %s24, 1
      %p61 = por %p59, %p60
      %p63 = scmp.ne.s32.totalorder %s46, %s62
      %p64 = scmp.eq.s32.totalorder %s24, 0
      %p65 = por %p63, %p64
      %s67 = sadd.s32 %s66, 1
      %p70 = scmp.eq.s32.totalorder %s18, 1
      %p71 = scmp.ne.s32.totalorder %s66, %s68
      %p72 = scmp.eq.s32.totalorder %s18, 0
      %p73 = por %p71, %p72
      %p74 = scmp.ne.s32.totalorder %s66, %s68
      %p75 = scmp.eq.s32.totalorder %s23, 1
      %p76 = por %p74, %p75
      %p77 = scmp.ne.s32.totalorder %s68, %s69
      %p78 = scmp.eq.s32.totalorder %s23, 0
      %p79 = por %p77, %p78
      %p80 = scmp.ne.s32.totalorder %s68, %s69
      %p81 = scmp.eq.s32.totalorder %s24, 1
      %p82 = por %p80, %p81
      %p84 = scmp.ne.s32.totalorder %s69, %s83
      %p85 = scmp.eq.s32.totalorder %s24, 0
      %p86 = por %p84, %p85
      %s88 = sadd.s32 %s87, 1
      %p91 = scmp.eq.s32.totalorder %s18, 1
      %p92 = scmp.ne.s32.totalorder %s87, %s89
      %p93 = scmp.eq.s32.totalorder %s18, 0
      %p94 = por %p92, %p93
      %p95 = scmp.ne.s32.totalorder %s87, %s89
      %p96 = scmp.eq.s32.totalorder %s23, 1
      %p97 = por %p95, %p96
      %p98 = scmp.ne.s32.totalorder %s89, %s90
      %p99 = scmp.eq.s32.totalorder %s23, 0
      %p100 = por %p98, %p99
      %p101 = scmp.ne.s32.totalorder %s89, %s90
      %p102 = scmp.eq.s32.totalorder %s24, 1
      %p103 = por %p101, %p102
      %p105 = scmp.ne.s32.totalorder %s90, %s104
      %p106 = scmp.eq.s32.totalorder %s24, 0
      %p107 = por %p105, %p106
      %s109 = sadd.s32 %s108, 1
      %p112 = scmp.eq.s32.totalorder %s18, 1
      %p113 = scmp.ne.s32.totalorder %s108, %s110
      %p114 = scmp.eq.s32.totalorder %s18, 0
      %p115 = por %p113, %p114
      %p116 = scmp.ne.s32.totalorder %s108, %s110
      %p117 = scmp.eq.s32.totalorder %s23, 1
      %p118 = por %p116, %p117
      %p119 = scmp.ne.s32.totalorder %s110, %s111
      %p120 = scmp.eq.s32.totalorder %s23, 0
      %p121 = por %p119, %p120
      %p122 = scmp.ne.s32.totalorder %s110, %s111
      %p123 = scmp.eq.s32.totalorder %s24, 1
      %p124 = por %p122, %p123
      %p126 = scmp.ne.s32.totalorder %s111, %s125
      %p127 = scmp.eq.s32.totalorder %s24, 0
      %p128 = por %p126, %p127
      %s130 = sadd.s32 %s129, 1
      %p133 = scmp.eq.s32.totalorder %s18, 1
      %p134 = scmp.ne.s32.totalorder %s129, %s131
      %p135 = scmp.eq.s32.totalorder %s18, 0
      %p136 = por %p134, %p135
      %p137 = scmp.ne.s32.totalorder %s129, %s131
      %p138 = scmp.eq.s32.totalorder %s23, 1
      %p139 = por %p137, %p138
      %p140 = scmp.ne.s32.totalorder %s131, %s132
      %p141 = scmp.eq.s32.totalorder %s23, 0
      %p142 = por %p140, %p141
      %p143 = scmp.ne.s32.totalorder %s131, %s132
      %p144 = scmp.eq.s32.totalorder %s24, 1
      %p145 = por %p143, %p144
      %p147 = scmp.ne.s32.totalorder %s132, %s146
      %p148 = scmp.eq.s32.totalorder %s24, 0
      %p149 = por %p147, %p148
      %s150 = ssub.s32 %s25, %s37
      %s151 = ssub.s32 %s26, %s33
      %s152 = sor.u32 %s150, %s151
      %p153 = scmp.eq.s32.totalorder %s152, 0
      %s155 = sadd.s32 %s154, 1
      %s156 = scalar_select %p153, %s154, %s155
      %p159 = pneg %p153
      %p160 = scmp.eq.s32.totalorder %s18, 1
      %p161 = por %p159, %p160
      %p162 = scmp.ne.s32.totalorder %s154, %s157
      %p163 = scmp.eq.s32.totalorder %s18, 0
      %p164 = por %p162, %p163
      %p165 = scmp.ne.s32.totalorder %s154, %s157
      %p166 = scmp.eq.s32.totalorder %s23, 1
      %p167 = por %p165, %p166
      %p168 = scmp.ne.s32.totalorder %s157, %s158
      %p169 = scmp.eq.s32.totalorder %s23, 0
      %p170 = por %p168, %p169
      %p171 = scmp.ne.s32.totalorder %s157, %s158
      %p172 = scmp.eq.s32.totalorder %s24, 1
      %p173 = por %p171, %p172
      %p175 = scmp.ne.s32.totalorder %s158, %s174
      %p176 = scmp.eq.s32.totalorder %s24, 0
      %p177 = por %p175, %p176
      %s178 = ssub.s32 %s25, %s37
      %s179 = ssub.s32 %s26, %s33
      %s180 = sor.u32 %s178, %s179
      %p181 = scmp.eq.s32.totalorder %s180, 0
      %s183 = sadd.s32 %s182, 1
      %s184 = scalar_select %p181, %s182, %s183
      %p187 = pneg %p181
      %p188 = scmp.eq.s32.totalorder %s18, 1
      %p189 = por %p187, %p188
      %p190 = scmp.ne.s32.totalorder %s182, %s185
      %p191 = scmp.eq.s32.totalorder %s18, 0
      %p192 = por %p190, %p191
      %p193 = scmp.ne.s32.totalorder %s182, %s185
      %p194 = scmp.eq.s32.totalorder %s23, 1
      %p195 = por %p193, %p194
      %p196 = scmp.ne.s32.totalorder %s185, %s186
      %p197 = scmp.eq.s32.totalorder %s23, 0
      %p198 = por %p196, %p197
      %p199 = scmp.ne.s32.totalorder %s185, %s186
      %p200 = scmp.eq.s32.totalorder %s24, 1
      %p201 = por %p199, %p200
      %p203 = scmp.ne.s32.totalorder %s186, %s202
      %p204 = scmp.eq.s32.totalorder %s24, 0
      %p205 = por %p203, %p204
      %s206 = ssub.s32 %s25, %s37
      %s207 = ssub.s32 %s26, %s33
      %s208 = sor.u32 %s206, %s207
      %p209 = scmp.eq.s32.totalorder %s208, 0
      %s211 = sadd.s32 %s210, 1
      %s212 = scalar_select %p209, %s210, %s211
      %p215 = pneg %p209
      %p216 = scmp.eq.s32.totalorder %s18, 1
      %p217 = por %p215, %p216
      %p218 = scmp.ne.s32.totalorder %s210, %s213
      %p219 = scmp.eq.s32.totalorder %s18, 0
      %p220 = por %p218, %p219
      %p221 = scmp.ne.s32.totalorder %s210, %s213
      %p222 = scmp.eq.s32.totalorder %s23, 1
      %p223 = por %p221, %p222
      %p224 = scmp.ne.s32.totalorder %s213, %s214
      %p225 = scmp.eq.s32.totalorder %s23, 0
      %p226 = por %p224, %p225
      %p227 = scmp.ne.s32.totalorder %s213, %s214
      %p228 = scmp.eq.s32.totalorder %s24, 1
      %p229 = por %p227, %p228
      %p231 = scmp.ne.s32.totalorder %s214, %s230
      %p232 = scmp.eq.s32.totalorder %s24, 0
      %p233 = por %p231, %p232
      %p234 = scmp.le.s32.totalorder 1, %s18
      %p235 = scmp.lt.s32.totalorder %s18, 3
      %p236 = pnand %p234, %p235
      %p237 = pneg %p236
      // Predicated region
      $region9: #{tpu_custom_call.1} parent=5 // pred_check
        _
      $region10: #{tpu_custom_call.1} parent=5 // pred_check_branch
        %239 = sbr.rel (%p236) target = $region12
      $region11: #{tpu_custom_call.1} parent=5 // pred_region
        %s240 = ssub.s32 %s18, 1
        // Predicated region
        $region13: #{tpu_custom_call.1} parent=11 // pred_check
          %p241 = pneg %p79
        $region14: #{tpu_custom_call.1} parent=11 // pred_check_branch
          %243 = sbr.rel (%p241) target = $region16
        $region15: #{tpu_custom_call.1} parent=11 // pred_region
          _
        $region16: #{tpu_custom_call.1} parent=11 // pred_fallthru
          _
        // Predicated region
        $region17: #{tpu_custom_call.1} parent=11 // pred_check
          %p244 = pneg %p100
        $region18: #{tpu_custom_call.1} parent=11 // pred_check_branch
          %246 = sbr.rel (%p244) target = $region20
        $region19: #{tpu_custom_call.1} parent=11 // pred_region
          _
        $region20: #{tpu_custom_call.1} parent=11 // pred_fallthru
          _
        // Predicated region
        $region21: #{tpu_custom_call.1} parent=11 // pred_check
          %p247 = pneg %p121
        $region22: #{tpu_custom_call.1} parent=11 // pred_check_branch
          %249 = sbr.rel (%p247) target = $region24
        $region23: #{tpu_custom_call.1} parent=11 // pred_region
          %s251 = ssub.s32 1024, 1024
          %252 = vsyncadd [#allocation5], %s251
          %s253 = sshll.u32 [#allocation4], 4
          %s254 = int_to_ptr.vmem [resolvable:$true] %s253
          %259 = dma.hbm_to_vmem [thread:$0]  %s3, 1024, %s254, [#allocation5], 128, 128, 8
        $region24: #{tpu_custom_call.1} parent=11 // pred_fallthru
          _
        // Predicated region
        $region25: #{tpu_custom_call.1} parent=11 // pred_check
          %p260 = pneg %p142
        $region26: #{tpu_custom_call.1} parent=11 // pred_check_branch
          %262 = sbr.rel (%p260) target = $region28
        $region27: #{tpu_custom_call.1} parent=11 // pred_region
          _
        $region28: #{tpu_custom_call.1} parent=11 // pred_fallthru
          _
      $region12: #{tpu_custom_call.1} parent=5 // pred_fallthru
        _
      %p263 = scmp.lt.s32.totalorder %s18, 2
      // Predicated region
      $region29: #{tpu_custom_call.1} parent=5 // pred_check
        %p264 = pneg %p263
      $region30: #{tpu_custom_call.1} parent=5 // pred_check_branch
        %266 = sbr.rel (%p264) target = $region32
      $region31: #{tpu_custom_call.1} parent=5 // pred_region
        // Predicated region
        $region33: #{tpu_custom_call.1} parent=31 // pred_check
          %p267 = pneg %p52
        $region34: #{tpu_custom_call.1} parent=31 // pred_check_branch
          %269 = sbr.rel (%p267) target = $region36
        $region35: #{tpu_custom_call.1} parent=31 // pred_region
          %s270 = sand.u32 %s42, 1
          %s271 = scalar_lea.sflag [#allocation3], %s270
          %s272 = sand.u32 %s42, 1
          %s273 = smul.addr %s272, 16
          %s274 = scalar_lea.vmem [#allocation2], %s273
          %s275 = smul.u32 2, %s26
          %s277 = ssub.s32 256, 256
          %278 = vsyncadd %s271, %s277
          %s279 = smul.addr %s25, 2
          %s280 = sadd.s32 %s275, %s279
          %s281 = smul.addr %s280, 128
          %s282 = scalar_lea.hbm %s0, %s281
          %s283 = sshll.u32 %s274, 4
          %s284 = int_to_ptr.vmem [resolvable:$true] %s283
          %289 = dma.hbm_to_vmem [thread:$0]  %s282, 256, %s284, %s271, 128, 128, 8
        $region36: #{tpu_custom_call.1} parent=31 // pred_fallthru
          _
      $region32: #{tpu_custom_call.1} parent=5 // pred_fallthru
        _
      %p290 = scmp.le.s32.totalorder 1, %s18
      %p291 = scmp.lt.s32.totalorder %s18, 3
      %p292 = pnand %p290, %p291
      %p293 = pneg %p292
      // Predicated region
      $region37: #{tpu_custom_call.1} parent=5 // pred_check
        _
      $region38: #{tpu_custom_call.1} parent=5 // pred_check_branch
        %295 = sbr.rel (%p292) target = $region40
      $region39: #{tpu_custom_call.1} parent=5 // pred_region
        %s296 = ssub.s32 %s18, 1
        %s297 = sand.u32 %s45, 1
        %s298 = scalar_lea.sflag [#allocation3], %s297
        %s299 = sand.u32 %s45, 1
        %s300 = smul.addr %s299, 16
        %s301 = scalar_lea.vmem [#allocation2], %s300
        // Predicated region
        $region41: #{tpu_custom_call.1} parent=39 // pred_check
          %p302 = pneg %p58
        $region42: #{tpu_custom_call.1} parent=39 // pred_check_branch
          %304 = sbr.rel (%p302) target = $region44
        $region43: #{tpu_custom_call.1} parent=39 // pred_region
          %305 = dma.done %s298, 256
        $region44: #{tpu_custom_call.1} parent=39 // pred_fallthru
          _
        // Predicated region
        $region45: #{tpu_custom_call.1} parent=39 // pred_check
          %p306 = pneg %p121
        $region46: #{tpu_custom_call.1} parent=39 // pred_check_branch
          %308 = sbr.rel (%p306) target = $region48
        $region47: #{tpu_custom_call.1} parent=39 // pred_region
          %309 = dma.done [#allocation5], 1024
        $region48: #{tpu_custom_call.1} parent=39 // pred_fallthru
          _
        %s310 = sand.u32 %s45, 1
        %s311 = scalar_lea.sflag [#allocation3], %s310
        %s312 = sand.u32 %s45, 1
        %s313 = smul.addr %s312, 16
        %s314 = scalar_lea.vmem [#allocation2], %s313
        %p315 = pneg %p58
        %p316 = pneg %p55
        %p317 = pneg %p79
        %p318 = pneg %p76
        %p319 = pneg %p100
        %p320 = pneg %p97
        %p321 = pneg %p121
        %p322 = pneg %p118
        %p323 = pneg %p142
        %p324 = pneg %p139
        %p325 = pneg %p170
        %p326 = pneg %p167
        %s327 = smul.u32 2, %s28
        %p328 = scmp.lt.s32.totalorder %s27, 1
        %s329 = scalar_select %p328, %s27, 1
        %p330 = scmp.lt.s32.totalorder %s327, 1
        %s331 = scalar_select %p330, %s327, 1
        %s332 = smul.addr %s329, 16
        %s333 = sadd.s32 %s331, %s332
        %s334 = smul.addr %s333, 4
        %s335 = scalar_lea.vmem %s5, %s334
        %p336 = pneg %p198
        %p337 = pneg %p195
        %s338 = smul.u32 2, %s28
        %p339 = scmp.lt.s32.totalorder %s27, 1
        %s340 = scalar_select %p339, %s27, 1
        %p341 = scmp.lt.s32.totalorder %s338, 1
        %s342 = scalar_select %p341, %s338, 1
        %s343 = smul.addr %s340, 16
        %s344 = sadd.s32 %s342, %s343
        %s345 = smul.addr %s344, 4
        %s346 = scalar_lea.vmem %s6, %s345
        %p347 = pneg %p226
        %p348 = pneg %p223
        %s349 = smul.u32 2, %s28
        %p350 = scmp.lt.s32.totalorder %s27, 1
        %s351 = scalar_select %p350, %s27, 1
        %p352 = scmp.lt.s32.totalorder %s349, 1
        %s353 = scalar_select %p352, %s349, 1
        %s354 = smul.addr %s351, 16
        %s355 = sadd.s32 %s353, %s354
        %s356 = smul.addr %s355, 4
        %s357 = scalar_lea.vmem %s7, %s356
        %s358 = smul.u32 2, %s28
        %s359 = smul.u32 2, %s28
        %p360 = scmp.lt.s32.totalorder %s27, 1
        %s361 = scalar_select %p360, %s27, 1
        %p362 = scmp.lt.s32.totalorder %s359, 1
        %s363 = scalar_select %p362, %s359, 1
        %s364 = smul.addr %s361, 16
        %s365 = sadd.s32 %s363, %s364
        %s366 = smul.addr %s365, 4
        %s367 = scalar_lea.vmem %s5, %s366
        %s368 = smul.u32 2, %s28
        %s369 = smul.u32 2, %s28
        %p370 = scmp.lt.s32.totalorder %s27, 1
        %s371 = scalar_select %p370, %s27, 1
        %p372 = scmp.lt.s32.totalorder %s369, 1
        %s373 = scalar_select %p372, %s369, 1
        %s374 = smul.addr %s371, 16
        %s375 = sadd.s32 %s373, %s374
        %s376 = smul.addr %s375, 4
        %s377 = scalar_lea.vmem %s6, %s376
        %s378 = smul.u32 2, %s28
        %s379 = smul.u32 2, %s28
        %p380 = scmp.lt.s32.totalorder %s27, 1
        %s381 = scalar_select %p380, %s27, 1
        %p382 = scmp.lt.s32.totalorder %s379, 1
        %s383 = scalar_select %p382, %s379, 1
        %s384 = smul.addr %s381, 16
        %s385 = sadd.s32 %s383, %s384
        %s386 = smul.addr %s385, 4
        %s387 = scalar_lea.vmem %s7, %s386
        %s388 = smul.u32 2, %s28
        %v390 = vld [vmem:[%s301] sm:$0xff]
        %v391 = vld [vmem:[%s301 + $0x8] sm:$0xff]
        %v392 = vld [vmem:[%s1] sm:$0x1]
        %v393 = vld [vmem:[%s2] sm:$0x1]
        %vm394 = vcmask 523264
        %v395 = vsel %vm394, %v390, 0.0
        %396 = vadd.xlane.f32.xlu0 %v395
        %v397 = vpop.xlane.xlu0 %396
        %v398 = vsel %vm394, %v391, 0.0
        %399 = vadd.xlane.f32.xlu0 %v398
        %v400 = vpop.xlane.xlu0 %399
        %v401 = vrcp.pop 64.0
        %v402 = vmul.f32 %v397, %v401
        %v403 = vmul.f32 %v400, %v401
        %v404 = vsub.f32 %v390, %v402
        %v405 = vsub.f32 %v391, %v403
        %v406 = vmul.f32 %v404, %v404
        %v407 = vmul.f32 %v405, %v405
        %v408 = vsel %vm394, %v406, 0.0
        %409 = vadd.xlane.f32.xlu0 %v408
        %v410 = vpop.xlane.xlu0 %409
        %v411 = vsel %vm394, %v407, 0.0
        %412 = vadd.xlane.f32.xlu0 %v411
        %v413 = vpop.xlane.xlu0 %412
        %v414 = vmul.f32 %v410, %v401
        %v415 = vmul.f32 %v413, %v401
        %v416 = vadd.f32 %v414, 1e-05
        %v417 = vadd.f32 %v415, 1e-05
        %v418 = vrsqrt.pop %v416
        %v419 = vrsqrt.pop %v417
        %v420 = vmul.f32 %v404, %v418
        %v421 = vmul.f32 %v405, %v419
        %v423 = vlaneseq
        %v424 = vshrl.u32 %v423, 7
        %v425 = vsub.s32 0, %v424
        %v426 = vrot.slane %v392, %v425
        %v428 = vmul.f32 %v420, %v426
        %v429 = vmul.f32 %v421, %v426
        %v431 = vlaneseq
        %v432 = vshrl.u32 %v431, 7
        %v433 = vsub.s32 0, %v432
        %v434 = vrot.slane %v393, %v433
        %v436 = vadd.f32 %v428, %v434
        %v437 = vadd.f32 %v429, %v434
        %v438 = vpack.c.bf16 %v437, %v436
        %v439 = vld [vmem:[#allocation4] sm:$0xff]
        %v440 = vld [vmem:[#allocation4 + $0x8] sm:$0xff]
        %v441 = vld [vmem:[#allocation4 + $0x10] sm:$0xff]
        %v442 = vld [vmem:[#allocation4 + $0x18] sm:$0xff]
        %v443 = vld [vmem:[#allocation4 + $0x20] sm:$0xff]
        %v444 = vld [vmem:[#allocation4 + $0x28] sm:$0xff]
        %v445 = vld [vmem:[#allocation4 + $0x30] sm:$0xff]
        %v446 = vld [vmem:[#allocation4 + $0x38] sm:$0xff]
        %v447 = vld [vmem:[%s4] sm:$0x3]
        %v449 = vlaneseq
        %v450 = vshrl.u32 %v449, 7
        %v451 = vsub.s32 0, %v450
        %v452 = vrot.slane %v447, %v451
        %v453 = vlaneseq
        %v454 = vshrl.u32 %v453, 7
        %v455 = vsub.s32 1, %v454
        %v456 = vrot.slane %v447, %v455
        %v467 = vunpack.c.l.b16 %v439
        %v468 = vunpack.c.h.b16 %v439
        %v469 = vunpack.c.l.b16 %v440
        %v470 = vunpack.c.h.b16 %v440
        %v471 = vunpack.c.l.b16 %v441
        %v472 = vunpack.c.h.b16 %v441
        %v473 = vunpack.c.l.b16 %v442
        %v474 = vunpack.c.h.b16 %v442
        %v475 = vunpack.c.l.b16 %v443
        %v476 = vunpack.c.h.b16 %v443
        %v477 = vunpack.c.l.b16 %v444
        %v478 = vunpack.c.h.b16 %v444
        %v479 = vunpack.c.l.b16 %v445
        %v480 = vunpack.c.h.b16 %v445
        %v481 = vunpack.c.l.b16 %v446
        %v482 = vunpack.c.h.b16 %v446
        %v483 = vpack.c.b16 %v469, %v467
        %v484 = vpack.c.b16 %v470, %v468
        %v485 = vpack.c.b16 %v473, %v471
        %v486 = vpack.c.b16 %v474, %v472
        %v487 = vpack.c.b16 %v477, %v475
        %v488 = vpack.c.b16 %v478, %v476
        %v489 = vpack.c.b16 %v481, %v479
        %v490 = vpack.c.b16 %v482, %v480
        %v500 = vsel %vm394, %v438, 0
        %502 = vmatprep.subr.bf16.mxu0 %v484
        %503 = vmatpush1.bf16.msra.mxu0 %v483
        %504 = vmatprep.subr.bf16.mxu0 %v486
        %505 = vmatpush1.bf16.msra.mxu0 %v485
        %506 = vmatprep.subr.bf16.mxu0 %v488
        %507 = vmatpush1.bf16.msra.mxu0 %v487
        %508 = vmatprep.subr.bf16.mxu0 %v490
        %509 = vmatpush1.bf16.msra.mxu0 %v489
        %510 = vmatprep.subr.bf16.mxu0 0
        %511 = vmatpush1.bf16.msra.mxu0 0
        %512 = vmatprep.subr.bf16.mxu0 0
        %513 = vmatpush1.bf16.msra.mxu0 0
        %514 = vmatprep.subr.bf16.mxu0 0
        %515 = vmatpush1.bf16.msra.mxu0 0
        %516 = vmatprep.subr.bf16.mxu0 0
        %517 = vmatpush1.bf16.msra.mxu0 0
        %518 = vmatprep.subr.bf16.mxu0 0
        %519 = vmatpush1.bf16.msra.mxu0 0
        %520 = vmatprep.subr.bf16.mxu0 0
        %521 = vmatpush1.bf16.msra.mxu0 0
        %522 = vmatprep.subr.bf16.mxu0 0
        %523 = vmatpush1.bf16.msra.mxu0 0
        %524 = vmatprep.subr.bf16.mxu0 0
        %525 = vmatpush1.bf16.msra.mxu0 0
        %526 = vmatprep.subr.bf16.mxu0 0
        %527 = vmatpush1.bf16.msra.mxu0 0
        %528 = vmatprep.subr.bf16.mxu0 0
        %529 = vmatpush1.bf16.msra.mxu0 0
        %530 = vmatprep.subr.bf16.mxu0 0
        %531 = vmatpush1.bf16.msra.mxu0 0
        %532 = vmatprep.subr.bf16.mxu0 0
        %533 = vmatpush1.bf16.msra.mxu0 0
        %534 = vmatprep.mubr.bf16.mxu0 0
        %535 = vmatmul.mubr.bf16.gmra.mrb[0].mxu0 %v500
        %v536 = vpop.f32.mrb[0].mxu0
        %v537 = vadd.f32 %v452, %v536
        %v538 = vpop.f32.mrb[0].mxu0
        %v539 = vadd.f32 %v456, %v538
        %v540 = vpop.f32.mrb[0].mxu0
        %v541 = vadd.f32 %v452, %v540
        %v542 = vpop.f32.mrb[0].mxu0
        %v543 = vadd.f32 %v456, %v542
        %544 = vdwg.mxu0
        %v545 = vpack.c.bf16 %v541, %v537
        %v546 = vpack.c.bf16 %v543, %v539
        %v548 = vunpack.c.l.b16 %v545
        %v549 = vunpack.c.h.b16 %v545
        %v550 = vpack.c.b16 %v548, %v548
        %v551 = vpack.c.b16 %v549, %v549
        %vm554 = vcmask 60416
        %555 = vst.msk [vmem:[%s367] sm:$0xf] %vm554, %v550
        %556 = vst.msk [vmem:[%s367 + $0x4] sm:$0xf] %vm554, %v551
        %557 = vrot.lane.b32.xlu0 %v550, 64
        %v558 = vpop.permute.xlu0 %557
        %559 = vrot.lane.b32.xlu0 %v551, 64
        %v560 = vpop.permute.xlu0 %559
        %563 = vst.msk [vmem:[%s377] sm:$0xf] %vm554, %v558
        %564 = vst.msk [vmem:[%s377 + $0x4] sm:$0xf] %vm554, %v560
        %v566 = vunpack.c.l.b16 %v546
        %v567 = vunpack.c.h.b16 %v546
        %v568 = vpack.c.b16 %v566, %v566
        %v569 = vpack.c.b16 %v567, %v567
        %572 = vst.msk [vmem:[%s387] sm:$0xf] %vm554, %v568
        %573 = vst.msk [vmem:[%s387 + $0x4] sm:$0xf] %vm554, %v569
        %574 = vrot.lane.b32.xlu0 %v550, 120
        %v575 = vpop.permute.xlu0 %574
        %576 = vrot.lane.b32.xlu0 %v551, 120
        %v577 = vpop.permute.xlu0 %576
        %s580 = scalar_lea.vmem %s367, 8
        %581 = vst.msk [vmem:[%s580] sm:$0xf] %vm554, %v575
        %582 = vst.msk [vmem:[%s580 + $0x4] sm:$0xf] %vm554, %v577
        %583 = vrot.lane.b32.xlu0 %v550, 56
        %v584 = vpop.permute.xlu0 %583
        %585 = vrot.lane.b32.xlu0 %v551, 56
        %v586 = vpop.permute.xlu0 %585
        %s589 = scalar_lea.vmem %s377, 8
        %590 = vst.msk [vmem:[%s589] sm:$0xf] %vm554, %v584
        %591 = vst.msk [vmem:[%s589 + $0x4] sm:$0xf] %vm554, %v586
        %592 = vrot.lane.b32.xlu0 %v568, 120
        %v593 = vpop.permute.xlu0 %592
        %594 = vrot.lane.b32.xlu0 %v569, 120
        %v595 = vpop.permute.xlu0 %594
        %s598 = scalar_lea.vmem %s387, 8
        %599 = vst.msk [vmem:[%s598] sm:$0xf] %vm554, %v593
        %600 = vst.msk [vmem:[%s598 + $0x4] sm:$0xf] %vm554, %v595
        %601 = vrot.lane.b32.xlu0 %v550, 112
        %v602 = vpop.permute.xlu0 %601
        %603 = vrot.lane.b32.xlu0 %v551, 112
        %v604 = vpop.permute.xlu0 %603
        %s607 = scalar_lea.vmem %s367, 16
        %608 = vst.msk [vmem:[%s607] sm:$0xf] %vm554, %v602
        %609 = vst.msk [vmem:[%s607 + $0x4] sm:$0xf] %vm554, %v604
        %610 = vrot.lane.b32.xlu0 %v550, 48
        %v611 = vpop.permute.xlu0 %610
        %612 = vrot.lane.b32.xlu0 %v551, 48
        %v613 = vpop.permute.xlu0 %612
        %s616 = scalar_lea.vmem %s377, 16
        %617 = vst.msk [vmem:[%s616] sm:$0xf] %vm554, %v611
        %618 = vst.msk [vmem:[%s616 + $0x4] sm:$0xf] %vm554, %v613
        %619 = vrot.lane.b32.xlu0 %v568, 112
        %v620 = vpop.permute.xlu0 %619
        %621 = vrot.lane.b32.xlu0 %v569, 112
        %v622 = vpop.permute.xlu0 %621
        %s625 = scalar_lea.vmem %s387, 16
        %626 = vst.msk [vmem:[%s625] sm:$0xf] %vm554, %v620
        %627 = vst.msk [vmem:[%s625 + $0x4] sm:$0xf] %vm554, %v622
        %628 = vrot.lane.b32.xlu0 %v550, 104
        %v629 = vpop.permute.xlu0 %628
        %630 = vrot.lane.b32.xlu0 %v551, 104
        %v631 = vpop.permute.xlu0 %630
        %s634 = scalar_lea.vmem %s367, 24
        %635 = vst.msk [vmem:[%s634] sm:$0xf] %vm554, %v629
        %636 = vst.msk [vmem:[%s634 + $0x4] sm:$0xf] %vm554, %v631
        %637 = vrot.lane.b32.xlu0 %v550, 40
        %v638 = vpop.permute.xlu0 %637
        %639 = vrot.lane.b32.xlu0 %v551, 40
        %v640 = vpop.permute.xlu0 %639
        %s643 = scalar_lea.vmem %s377, 24
        %644 = vst.msk [vmem:[%s643] sm:$0xf] %vm554, %v638
        %645 = vst.msk [vmem:[%s643 + $0x4] sm:$0xf] %vm554, %v640
        %646 = vrot.lane.b32.xlu0 %v568, 104
        %v647 = vpop.permute.xlu0 %646
        %648 = vrot.lane.b32.xlu0 %v569, 104
        %v649 = vpop.permute.xlu0 %648
        %s652 = scalar_lea.vmem %s387, 24
        %653 = vst.msk [vmem:[%s652] sm:$0xf] %vm554, %v647
        %654 = vst.msk [vmem:[%s652 + $0x4] sm:$0xf] %vm554, %v649
        %655 = vrot.lane.b32.xlu0 %v550, 96
        %v656 = vpop.permute.xlu0 %655
        %657 = vrot.lane.b32.xlu0 %v551, 96
        %v658 = vpop.permute.xlu0 %657
        %s661 = scalar_lea.vmem %s367, 32
        %662 = vst.msk [vmem:[%s661] sm:$0xf] %vm554, %v656
        %663 = vst.msk [vmem:[%s661 + $0x4] sm:$0xf] %vm554, %v658
        %664 = vrot.lane.b32.xlu0 %v550, 32
        %v665 = vpop.permute.xlu0 %664
        %666 = vrot.lane.b32.xlu0 %v551, 32
        %v667 = vpop.permute.xlu0 %666
        %s670 = scalar_lea.vmem %s377, 32
        %671 = vst.msk [vmem:[%s670] sm:$0xf] %vm554, %v665
        %672 = vst.msk [vmem:[%s670 + $0x4] sm:$0xf] %vm554, %v667
        %673 = vrot.lane.b32.xlu0 %v568, 96
        %v674 = vpop.permute.xlu0 %673
        %675 = vrot.lane.b32.xlu0 %v569, 96
        %v676 = vpop.permute.xlu0 %675
        %s679 = scalar_lea.vmem %s387, 32
        %680 = vst.msk [vmem:[%s679] sm:$0xf] %vm554, %v674
        %681 = vst.msk [vmem:[%s679 + $0x4] sm:$0xf] %vm554, %v676
        %682 = vrot.lane.b32.xlu0 %v550, 88
        %v683 = vpop.permute.xlu0 %682
        %684 = vrot.lane.b32.xlu0 %v551, 88
        %v685 = vpop.permute.xlu0 %684
        %s688 = scalar_lea.vmem %s367, 40
        %689 = vst.msk [vmem:[%s688] sm:$0xf] %vm554, %v683
        %690 = vst.msk [vmem:[%s688 + $0x4] sm:$0xf] %vm554, %v685
        %691 = vrot.lane.b32.xlu0 %v550, 24
        %v692 = vpop.permute.xlu0 %691
        %693 = vrot.lane.b32.xlu0 %v551, 24
        %v694 = vpop.permute.xlu0 %693
        %s697 = scalar_lea.vmem %s377, 40
        %698 = vst.msk [vmem:[%s697] sm:$0xf] %vm554, %v692
        %699 = vst.msk [vmem:[%s697 + $0x4] sm:$0xf] %vm554, %v694
        %700 = vrot.lane.b32.xlu0 %v568, 88
        %v701 = vpop.permute.xlu0 %700
        %702 = vrot.lane.b32.xlu0 %v569, 88
        %v703 = vpop.permute.xlu0 %702
        %s706 = scalar_lea.vmem %s387, 40
        %707 = vst.msk [vmem:[%s706] sm:$0xf] %vm554, %v701
        %708 = vst.msk [vmem:[%s706 + $0x4] sm:$0xf] %vm554, %v703
        %709 = vrot.lane.b32.xlu0 %v550, 80
        %v710 = vpop.permute.xlu0 %709
        %711 = vrot.lane.b32.xlu0 %v551, 80
        %v712 = vpop.permute.xlu0 %711
        %s715 = scalar_lea.vmem %s367, 48
        %716 = vst.msk [vmem:[%s715] sm:$0xf] %vm554, %v710
        %717 = vst.msk [vmem:[%s715 + $0x4] sm:$0xf] %vm554, %v712
        %718 = vrot.lane.b32.xlu0 %v550, 16
        %v719 = vpop.permute.xlu0 %718
        %720 = vrot.lane.b32.xlu0 %v551, 16
        %v721 = vpop.permute.xlu0 %720
        %s724 = scalar_lea.vmem %s377, 48
        %725 = vst.msk [vmem:[%s724] sm:$0xf] %vm554, %v719
        %726 = vst.msk [vmem:[%s724 + $0x4] sm:$0xf] %vm554, %v721
        %727 = vrot.lane.b32.xlu0 %v568, 80
        %v728 = vpop.permute.xlu0 %727
        %729 = vrot.lane.b32.xlu0 %v569, 80
        %v730 = vpop.permute.xlu0 %729
        %s733 = scalar_lea.vmem %s387, 48
        %734 = vst.msk [vmem:[%s733] sm:$0xf] %vm554, %v728
        %735 = vst.msk [vmem:[%s733 + $0x4] sm:$0xf] %vm554, %v730
        %736 = vrot.lane.b32.xlu0 %v550, 72
        %v737 = vpop.permute.xlu0 %736
        %738 = vrot.lane.b32.xlu0 %v551, 72
        %v739 = vpop.permute.xlu0 %738
        %s742 = scalar_lea.vmem %s367, 56
        %743 = vst.msk [vmem:[%s742] sm:$0xf] %vm554, %v737
        %744 = vst.msk [vmem:[%s742 + $0x4] sm:$0xf] %vm554, %v739
        %745 = vrot.lane.b32.xlu0 %v550, 8
        %v746 = vpop.permute.xlu0 %745
        %747 = vrot.lane.b32.xlu0 %v551, 8
        %v748 = vpop.permute.xlu0 %747
        %s751 = scalar_lea.vmem %s377, 56
        %752 = vst.msk [vmem:[%s751] sm:$0xf] %vm554, %v746
        %753 = vst.msk [vmem:[%s751 + $0x4] sm:$0xf] %vm554, %v748
        %754 = vrot.lane.b32.xlu0 %v568, 72
        %v755 = vpop.permute.xlu0 %754
        %756 = vrot.lane.b32.xlu0 %v569, 72
        %v757 = vpop.permute.xlu0 %756
        %s760 = scalar_lea.vmem %s387, 56
        %761 = vst.msk [vmem:[%s760] sm:$0xf] %vm554, %v755
        %762 = vst.msk [vmem:[%s760 + $0x4] sm:$0xf] %vm554, %v757
        %s763 = smul.u32 2, %s28
        %p764 = scmp.lt.s32.totalorder %s27, 1
        %s765 = scalar_select %p764, %s27, 1
        %p766 = scmp.lt.s32.totalorder %s763, 1
        %s767 = scalar_select %p766, %s763, 1
        %s768 = smul.addr %s765, 16
        %s769 = sadd.s32 %s767, %s768
        %s770 = smul.addr %s769, 4
        %s771 = scalar_lea.vmem %s5, %s770
        %s772 = smul.u32 2, %s28
        %p773 = scmp.lt.s32.totalorder %s27, 1
        %s774 = scalar_select %p773, %s27, 1
        %p775 = scmp.lt.s32.totalorder %s772, 1
        %s776 = scalar_select %p775, %s772, 1
        %s777 = smul.addr %s774, 16
        %s778 = sadd.s32 %s776, %s777
        %s779 = smul.addr %s778, 4
        %s780 = scalar_lea.vmem %s6, %s779
        %s781 = smul.u32 2, %s28
        %p782 = scmp.lt.s32.totalorder %s27, 1
        %s783 = scalar_select %p782, %s27, 1
        %p784 = scmp.lt.s32.totalorder %s781, 1
        %s785 = scalar_select %p784, %s781, 1
        %s786 = smul.addr %s783, 16
        %s787 = sadd.s32 %s785, %s786
        %s788 = smul.addr %s787, 4
        %s789 = scalar_lea.vmem %s7, %s788
        // Predicated region
        $region49: #{tpu_custom_call.1} parent=39 // pred_check
          %p790 = pneg %p167
        $region50: #{tpu_custom_call.1} parent=39 // pred_check_branch
          %792 = sbr.rel (%p790) target = $region52
        $region51: #{tpu_custom_call.1} parent=39 // pred_region
          %s793 = smul.u32 2, %s28
        $region52: #{tpu_custom_call.1} parent=39 // pred_fallthru
          _
        // Predicated region
        $region53: #{tpu_custom_call.1} parent=39 // pred_check
          %p794 = pneg %p195
        $region54: #{tpu_custom_call.1} parent=39 // pred_check_branch
          %796 = sbr.rel (%p794) target = $region56
        $region55: #{tpu_custom_call.1} parent=39 // pred_region
          %s797 = smul.u32 2, %s28
        $region56: #{tpu_custom_call.1} parent=39 // pred_fallthru
          _
        // Predicated region
        $region57: #{tpu_custom_call.1} parent=39 // pred_check
          %p798 = pneg %p223
        $region58: #{tpu_custom_call.1} parent=39 // pred_check_branch
          %800 = sbr.rel (%p798) target = $region60
        $region59: #{tpu_custom_call.1} parent=39 // pred_region
          %s801 = smul.u32 2, %s28
        $region60: #{tpu_custom_call.1} parent=39 // pred_fallthru
          _
      $region40: #{tpu_custom_call.1} parent=5 // pred_fallthru
        _
      %p802 = scmp.le.s32.totalorder 2, %s18
      // Predicated region
      $region61: #{tpu_custom_call.1} parent=5 // pred_check
        %p803 = pneg %p802
      $region62: #{tpu_custom_call.1} parent=5 // pred_check_branch
        %805 = sbr.rel (%p803) target = $region64
      $region63: #{tpu_custom_call.1} parent=5 // pred_region
        %s806 = ssub.s32 %s18, 2
        // Predicated region
        $region65: #{tpu_custom_call.1} parent=63 // pred_check
          %p807 = pneg %p173
        $region66: #{tpu_custom_call.1} parent=63 // pred_check_branch
          %809 = sbr.rel (%p807) target = $region68
        $region67: #{tpu_custom_call.1} parent=63 // pred_region
          %s810 = smul.u32 2, %s30
          %p811 = scmp.lt.s32.totalorder %s29, 1
          %s812 = scalar_select %p811, %s29, 1
          %p813 = scmp.lt.s32.totalorder %s810, 1
          %s814 = scalar_select %p813, %s810, 1
          %s815 = smul.addr %s812, 16
          %s816 = sadd.s32 %s814, %s815
          %s817 = smul.addr %s816, 4
          %s818 = scalar_lea.vmem %s5, %s817
        $region68: #{tpu_custom_call.1} parent=63 // pred_fallthru
          _
        // Predicated region
        $region69: #{tpu_custom_call.1} parent=63 // pred_check
          %p819 = pneg %p201
        $region70: #{tpu_custom_call.1} parent=63 // pred_check_branch
          %821 = sbr.rel (%p819) target = $region72
        $region71: #{tpu_custom_call.1} parent=63 // pred_region
          %s822 = smul.u32 2, %s30
          %p823 = scmp.lt.s32.totalorder %s29, 1
          %s824 = scalar_select %p823, %s29, 1
          %p825 = scmp.lt.s32.totalorder %s822, 1
          %s826 = scalar_select %p825, %s822, 1
          %s827 = smul.addr %s824, 16
          %s828 = sadd.s32 %s826, %s827
          %s829 = smul.addr %s828, 4
          %s830 = scalar_lea.vmem %s6, %s829
        $region72: #{tpu_custom_call.1} parent=63 // pred_fallthru
          _
        // Predicated region
        $region73: #{tpu_custom_call.1} parent=63 // pred_check
          %p831 = pneg %p229
        $region74: #{tpu_custom_call.1} parent=63 // pred_check_branch
          %833 = sbr.rel (%p831) target = $region76
        $region75: #{tpu_custom_call.1} parent=63 // pred_region
          %s834 = smul.u32 2, %s30
          %p835 = scmp.lt.s32.totalorder %s29, 1
          %s836 = scalar_select %p835, %s29, 1
          %p837 = scmp.lt.s32.totalorder %s834, 1
          %s838 = scalar_select %p837, %s834, 1
          %s839 = smul.addr %s836, 16
          %s840 = sadd.s32 %s838, %s839
          %s841 = smul.addr %s840, 4
          %s842 = scalar_lea.vmem %s7, %s841
        $region76: #{tpu_custom_call.1} parent=63 // pred_fallthru
          _
      $region64: #{tpu_custom_call.1} parent=5 // pred_fallthru
        _
    $region6: #{tpu_custom_call.1} parent=1 // loop_footer
      %s22 = sadd.s32 1, %s18
    $region7: #{tpu_custom_call.1} parent=1 // loop_footer_branch
      %17 = sbr.rel target = $region3
    $region8: #{tpu_custom_call.1} parent=1 // loop_exit
      _
    %843 = vsyncpa [#allocation3], 1
    %s844 = scalar_lea.sflag [#allocation3], 1
    %845 = vsyncpa %s844, 1
    %846 = vsyncpa [#allocation5], 1

</llo_original>
